<compile_context>
chip_gen: v6e
topology: v6e:2x2x1
jax: 0.10.0
libtpu: 0.0.40
codegen_flags: <defaults>
</compile_context>

<pallas_src>
import functools
import math

import jax
import jax.numpy as jnp
from jax import lax
from jax.experimental import pallas as pl
from jax.experimental.pallas import tpu as pltpu


def mha_kernel(x_ref, wqkv_ref, wo_ref, o_ref, *, n_heads, causal):
    """Fused MHA for a (B_tile, L, D) block. Requires L == D // n_heads (ref quirk)."""
    B_tile, L, D = x_ref.shape
    d_k = D // n_heads
    R = B_tile * L
    scale = 1.0 / math.sqrt(d_k)

    w_qkv = wqkv_ref[...]                              # [3D, D], native dtype
    wo = wo_ref[...]                                   # [D, D],  native dtype

    # (B_tile, L, D) -> (B_tile*L, D): merges leading dims only -> free reshape.
    # Feed the MXU in the weights' dtype (bf16-native on v6e/v7x); accumulate f32.
    x_rows = x_ref[...].reshape(R, D).astype(w_qkv.dtype)

    # Fused Q/K/V projection: ONE MXU matmul, contraction on dim 1 of both
    # operands (== x @ W_qkv^T without materialising any transpose).
    qkv = lax.dot_general(x_rows, w_qkv, (((1,), (1,)), ((), ())),
                          preferred_element_type=jnp.float32)      # [R, 3D] f32

    if causal:
        row = lax.broadcasted_iota(jnp.int32, (L, L), 0)
        col = lax.broadcasted_iota(jnp.int32, (L, L), 1)
        keep = (col <= row)[None, :, :]                # [1, L, L], hoisted once

    heads = []
    # n_heads is small and static -> fully unrolled; each iteration uses batched
    # einsums over the B_tile axis (contraction on the LAST dim -> no transposes).
    for h in range(n_heads):
        qh = qkv[:, h * d_k:(h + 1) * d_k].reshape(B_tile, L, d_k)
        kh = qkv[:, D + h * d_k:D + (h + 1) * d_k].reshape(B_tile, L, d_k)
        vh = qkv[:, 2 * D + h * d_k:2 * D + (h + 1) * d_k].reshape(B_tile, L, d_k)

        s = jnp.einsum("blk,bmk->blm", qh, kh,
                       preferred_element_type=jnp.float32) * scale  # [B,L,L]
        if causal:
            s = jnp.where(keep, s, jnp.float32(-1e30))   # finite mask: no NaN risk

        # Numerically-stable softmax along keys; divide on the EUP slot.
        m = jnp.max(s, axis=-1, keepdims=True)
        p = jnp.exp(s - m)
        denom = jnp.sum(p, axis=-1, keepdims=True)
        p = p * pl.reciprocal(denom, approx=True)

        # Reference quirk: softmax(QK^T) @ V^T  (valid because L == d_k).
        ah = jnp.einsum("blj,bmj->blm", p, vh,
                        preferred_element_type=jnp.float32)          # [B,L,L]
        heads.append(ah)

    # concat_heads: [B_tile, L, n_heads*L] == [B_tile, L, D]; leading-dim merge is free.
    concat_rows = jnp.concatenate(heads, axis=-1).reshape(R, D)

    # Single output projection (== concat @ Wo^T), contraction on dim 1 of both.
    out_rows = lax.dot_general(concat_rows.astype(wo.dtype), wo,
                               (((1,), (1,)), ((), ())),
                               preferred_element_type=jnp.float32)   # [R, D]

    o_ref[...] = out_rows.reshape(B_tile, L, D).astype(o_ref.dtype)


def _pick_b_tile(batch, target):
    for t in range(min(target, batch), 0, -1):
        if batch % t == 0:
            return t
    return 1


def multi_head_attention(x, wq, wk, wv, wo, *, n_heads, in_decoder=False, b_tile=16):
    """Pallas port of MultiHeadAttention.forward.

    x: [L, D] (module signature) or [B, L, D] (batched); weights: [D, D].
    """
    squeeze = x.ndim == 2
    if squeeze:
        x = x[None]
    B, L, D = x.shape
    assert D % n_heads == 0
    d_k = D // n_heads
    # The reference module's `@ V.transpose(-2, -1)` + reshape requires this:
    assert L == d_k, "reference MultiHeadAttention only supports seq_len == d_k"

    # Fuse the three projection weights into one operand (one MXU push per step).
    w_qkv = jnp.concatenate([wq, wk, wv], axis=0)      # [3D, D]

    bt = _pick_b_tile(B, b_tile)
    kernel = functools.partial(mha_kernel, n_heads=n_heads, causal=bool(in_decoder))
    out = pl.pallas_call(
        kernel,
        out_shape=jax.ShapeDtypeStruct((B, L, D), x.dtype),
        grid=(B // bt,),
        in_specs=[
            pl.BlockSpec((bt, L, D), lambda i: (i, 0, 0)),
            pl.BlockSpec((3 * D, D), lambda i: (0, 0)),   # constant block -> DMA'd once
            pl.BlockSpec((D, D), lambda i: (0, 0)),
        ],
        out_specs=pl.BlockSpec((bt, L, D), lambda i: (i, 0, 0)),
        compiler_params=pltpu.CompilerParams(
            dimension_semantics=("parallel",)),           # shards across v7x's 2 TCs
    )(x, w_qkv, wo)
    return out[0] if squeeze else out


def _reference(x, wq, wk, wv, wo, *, n_heads, in_decoder=False):
    """Pure-JAX transcription of the PyTorch forward (including the V^T quirk)."""
    L, D = x.shape
    d_k = D // n_heads
    hi = lax.Precision.HIGHEST
    q = jnp.dot(x, wq.T, precision=hi).reshape(L, n_heads, d_k).transpose(1, 0, 2)
    k = jnp.dot(x, wk.T, precision=hi).reshape(L, n_heads, d_k).transpose(1, 0, 2)
    v = jnp.dot(x, wv.T, precision=hi).reshape(L, n_heads, d_k).transpose(1, 0, 2)
    s = jnp.einsum("hld,hmd->hlm", q, k, precision=hi) / math.sqrt(d_k)
    if in_decoder:
        row = jnp.arange(L)[:, None]
        col = jnp.arange(L)[None, :]
        s = jnp.where((col > row)[None, :, :], -jnp.inf, s)
    p = jax.nn.softmax(s, axis=-1)
    attn = jnp.einsum("hlk,hmk->hlm", p, v, precision=hi)     # P @ V^T (quirk)
    concat = attn.transpose(1, 0, 2).reshape(L, n_heads * L)  # [L, D]
    return jnp.dot(concat, wo.T, precision=hi)


if __name__ == "__main__":
    # Shapes implied by the module: seq=8, d_embedding=32, n_heads=4 -> d_k=8 (== seq).
    L, D, H = 8, 32, 4
    B = 64  # batched case: grid of 4 steps, 128 rows per matmul per step
    key = jax.random.PRNGKey(0)
    kx, kb, kq, kk, kv, ko = jax.random.split(key, 6)
    lim = math.sqrt(3.0 / D)  # matches the PyTorch uniform(-sqrt(3/D), sqrt(3/D)) init
    x1 = jax.random.normal(kx, (L, D), dtype=jnp.float32)          # module signature
    xb = jax.random.normal(kb, (B, L, D), dtype=jnp.float32)       # batched
    wq = jax.random.uniform(kq, (D, D), jnp.float32, -lim, lim)
    wk = jax.random.uniform(kk, (D, D), jnp.float32, -lim, lim)
    wv = jax.random.uniform(kv, (D, D), jnp.float32, -lim, lim)
    wo = jax.random.uniform(ko, (D, D), jnp.float32, -lim, lim)

    # Tolerance: default (fast) MXU precision + approx EUP reciprocal in the
    # kernel vs Precision.HIGHEST reference -> a few 1e-3 absolute is expected.
    tol = dict(atol=1e-2, rtol=1e-2)
    for in_decoder in (False, True):
        # Single-sequence path (exact module forward signature).
        o1 = jax.block_until_ready(
            multi_head_attention(x1, wq, wk, wv, wo, n_heads=H, in_decoder=in_decoder))
        r1 = _reference(x1, wq, wk, wv, wo, n_heads=H, in_decoder=in_decoder)
        assert o1.shape == (L, D)
        assert jnp.allclose(o1, r1, **tol), (
            f"single-seq mismatch (in_decoder={in_decoder}): "
            f"max abs err = {float(jnp.max(jnp.abs(o1 - r1)))}")

        # Batched path (the perf-relevant configuration).
        ob = jax.block_until_ready(
            multi_head_attention(xb, wq, wk, wv, wo, n_heads=H, in_decoder=in_decoder))
        rb = jax.vmap(lambda xs: _reference(xs, wq, wk, wv, wo,
                                            n_heads=H, in_decoder=in_decoder))(xb)
        assert ob.shape == (B, L, D)
        assert jnp.allclose(ob, rb, **tol), (
            f"batched mismatch (in_decoder={in_decoder}): "
            f"max abs err = {float(jnp.max(jnp.abs(ob - rb)))}")

    print("KERNEL_OK")
</pallas_src>

<mosaic_0001>
module attributes {stable_mosaic.version = 11 : i64} {
  func.func @mha_kernel(%arg0: i32, %arg1: memref<1x8x32xf32, #tpu.memory_space<vmem>>, %arg2: memref<96x32xf32, #tpu.memory_space<vmem>>, %arg3: memref<32x32xf32, #tpu.memory_space<vmem>>, %arg4: memref<1x8x32xf32, #tpu.memory_space<vmem>>) attributes {dimension_semantics = [#tpu.dimension_semantics<parallel>], iteration_bounds = array<i64: 1>, scalar_prefetch = 0 : i64, scratch_operands = 0 : i64, tpu.core_type = #tpu.core_type<tc>, window_params = [{transform_indices = @transform_0, window_bounds = array<i64: 1, 8, 32>}, {pipeline_mode = #tpu.pipeline_mode<synchronous>, transform_indices = @transform_1, window_bounds = array<i64: 96, 32>}, {pipeline_mode = #tpu.pipeline_mode<synchronous>, transform_indices = @transform_2, window_bounds = array<i64: 32, 32>}, {transform_indices = @transform_3, window_bounds = array<i64: 1, 8, 32>}]} {
    %c0 = arith.constant 0 : index
    %c0_0 = arith.constant 0 : index
    %0 = vector.load %arg2[%c0, %c0_0] : memref<96x32xf32, #tpu.memory_space<vmem>>, vector<96x32xf32>
    %c0_1 = arith.constant 0 : index
    %c0_2 = arith.constant 0 : index
    %1 = vector.load %arg3[%c0_1, %c0_2] : memref<32x32xf32, #tpu.memory_space<vmem>>, vector<32x32xf32>
    %c0_3 = arith.constant 0 : index
    %c0_4 = arith.constant 0 : index
    %c0_5 = arith.constant 0 : index
    %2 = vector.load %arg1[%c0_3, %c0_4, %c0_5] : memref<1x8x32xf32, #tpu.memory_space<vmem>>, vector<1x8x32xf32>
    %3 = vector.shape_cast %2 : vector<1x8x32xf32> to vector<8x32xf32>
    %cst = arith.constant dense<0.000000e+00> : vector<8x96xf32>
    %4 = tpu.matmul %3, %0, %cst {dimension_numbers = #tpu.dot_dimension_numbers<[1], [1], [0], [0], [0, 0, 1, 0], [], []>} : vector<8x32xf32>, vector<96x32xf32>, vector<8x96xf32> -> vector<8x96xf32>
    %5 = vector.extract_strided_slice %4 {offsets = [0, 0], sizes = [8, 8], strides = [1, 1]} : vector<8x96xf32> to vector<8x8xf32>
    %6 = vector.shape_cast %5 : vector<8x8xf32> to vector<1x8x8xf32>
    %7 = vector.extract_strided_slice %4 {offsets = [0, 32], sizes = [8, 8], strides = [1, 1]} : vector<8x96xf32> to vector<8x8xf32>
    %8 = vector.shape_cast %7 : vector<8x8xf32> to vector<1x8x8xf32>
    %9 = vector.extract_strided_slice %4 {offsets = [0, 64], sizes = [8, 8], strides = [1, 1]} : vector<8x96xf32> to vector<8x8xf32>
    %10 = vector.shape_cast %9 : vector<8x8xf32> to vector<1x8x8xf32>
    "tpu.trace_start"() <{level = 10 : i32, message = "blk,bmk->blm"}> : () -> ()
    %cst_6 = arith.constant dense<0.000000e+00> : vector<1x8x8xf32>
    %11 = tpu.matmul %6, %8, %cst_6 {dimension_numbers = #tpu.dot_dimension_numbers<[2], [2], [1], [1], [0, 0, 0, 1, 1, 1], [0], [0]>} : vector<1x8x8xf32>, vector<1x8x8xf32>, vector<1x8x8xf32> -> vector<1x8x8xf32>
    "tpu.trace_stop"() : () -> ()
    %cst_7 = arith.constant 0.353553385 : f32
    %12 = vector.broadcast %cst_7 : f32 to vector<1x8x8xf32>
    %13 = arith.mulf %11, %12 : vector<1x8x8xf32>
    %cst_8 = arith.constant dense<0xFF800000> : vector<1x8xf32>
    %14 = vector.multi_reduction <maximumf>, %13, %cst_8 [2] : vector<1x8x8xf32> to vector<1x8xf32>
    %15 = vector.shape_cast %14 : vector<1x8xf32> to vector<1x8x1xf32>
    %16 = vector.broadcast %15 : vector<1x8x1xf32> to vector<1x8x8xf32>
    %17 = arith.subf %13, %16 : vector<1x8x8xf32>
    %18 = math.exp %17 : vector<1x8x8xf32>
    %cst_9 = arith.constant dense<0.000000e+00> : vector<1x8xf32>
    %19 = vector.multi_reduction <add>, %18, %cst_9 [2] : vector<1x8x8xf32> to vector<1x8xf32>
    %20 = vector.shape_cast %19 : vector<1x8xf32> to vector<1x8x1xf32>
    %21 = tpu.reciprocal %20 {approx = true} : vector<1x8x1xf32> -> vector<1x8x1xf32>
    %22 = vector.broadcast %21 : vector<1x8x1xf32> to vector<1x8x8xf32>
    %23 = arith.mulf %18, %22 : vector<1x8x8xf32>
    "tpu.trace_start"() <{level = 10 : i32, message = "blj,bmj->blm"}> : () -> ()
    %cst_10 = arith.constant dense<0.000000e+00> : vector<1x8x8xf32>
    %24 = tpu.matmul %23, %10, %cst_10 {dimension_numbers = #tpu.dot_dimension_numbers<[2], [2], [1], [1], [0, 0, 0, 1, 1, 1], [0], [0]>} : vector<1x8x8xf32>, vector<1x8x8xf32>, vector<1x8x8xf32> -> vector<1x8x8xf32>
    "tpu.trace_stop"() : () -> ()
    %25 = vector.extract_strided_slice %4 {offsets = [0, 8], sizes = [8, 8], strides = [1, 1]} : vector<8x96xf32> to vector<8x8xf32>
    %26 = vector.shape_cast %25 : vector<8x8xf32> to vector<1x8x8xf32>
    %27 = vector.extract_strided_slice %4 {offsets = [0, 40], sizes = [8, 8], strides = [1, 1]} : vector<8x96xf32> to vector<8x8xf32>
    %28 = vector.shape_cast %27 : vector<8x8xf32> to vector<1x8x8xf32>
    %29 = vector.extract_strided_slice %4 {offsets = [0, 72], sizes = [8, 8], strides = [1, 1]} : vector<8x96xf32> to vector<8x8xf32>
    %30 = vector.shape_cast %29 : vector<8x8xf32> to vector<1x8x8xf32>
    "tpu.trace_start"() <{level = 10 : i32, message = "blk,bmk->blm"}> : () -> ()
    %cst_11 = arith.constant dense<0.000000e+00> : vector<1x8x8xf32>
    %31 = tpu.matmul %26, %28, %cst_11 {dimension_numbers = #tpu.dot_dimension_numbers<[2], [2], [1], [1], [0, 0, 0, 1, 1, 1], [0], [0]>} : vector<1x8x8xf32>, vector<1x8x8xf32>, vector<1x8x8xf32> -> vector<1x8x8xf32>
    "tpu.trace_stop"() : () -> ()
    %cst_12 = arith.constant 0.353553385 : f32
    %32 = vector.broadcast %cst_12 : f32 to vector<1x8x8xf32>
    %33 = arith.mulf %31, %32 : vector<1x8x8xf32>
    %cst_13 = arith.constant dense<0xFF800000> : vector<1x8xf32>
    %34 = vector.multi_reduction <maximumf>, %33, %cst_13 [2] : vector<1x8x8xf32> to vector<1x8xf32>
    %35 = vector.shape_cast %34 : vector<1x8xf32> to vector<1x8x1xf32>
    %36 = vector.broadcast %35 : vector<1x8x1xf32> to vector<1x8x8xf32>
    %37 = arith.subf %33, %36 : vector<1x8x8xf32>
    %38 = math.exp %37 : vector<1x8x8xf32>
    %cst_14 = arith.constant dense<0.000000e+00> : vector<1x8xf32>
    %39 = vector.multi_reduction <add>, %38, %cst_14 [2] : vector<1x8x8xf32> to vector<1x8xf32>
    %40 = vector.shape_cast %39 : vector<1x8xf32> to vector<1x8x1xf32>
    %41 = tpu.reciprocal %40 {approx = true} : vector<1x8x1xf32> -> vector<1x8x1xf32>
    %42 = vector.broadcast %41 : vector<1x8x1xf32> to vector<1x8x8xf32>
    %43 = arith.mulf %38, %42 : vector<1x8x8xf32>
    "tpu.trace_start"() <{level = 10 : i32, message = "blj,bmj->blm"}> : () -> ()
    %cst_15 = arith.constant dense<0.000000e+00> : vector<1x8x8xf32>
    %44 = tpu.matmul %43, %30, %cst_15 {dimension_numbers = #tpu.dot_dimension_numbers<[2], [2], [1], [1], [0, 0, 0, 1, 1, 1], [0], [0]>} : vector<1x8x8xf32>, vector<1x8x8xf32>, vector<1x8x8xf32> -> vector<1x8x8xf32>
    "tpu.trace_stop"() : () -> ()
    %45 = vector.extract_strided_slice %4 {offsets = [0, 16], sizes = [8, 8], strides = [1, 1]} : vector<8x96xf32> to vector<8x8xf32>
    %46 = vector.shape_cast %45 : vector<8x8xf32> to vector<1x8x8xf32>
    %47 = vector.extract_strided_slice %4 {offsets = [0, 48], sizes = [8, 8], strides = [1, 1]} : vector<8x96xf32> to vector<8x8xf32>
    %48 = vector.shape_cast %47 : vector<8x8xf32> to vector<1x8x8xf32>
    %49 = vector.extract_strided_slice %4 {offsets = [0, 80], sizes = [8, 8], strides = [1, 1]} : vector<8x96xf32> to vector<8x8xf32>
    %50 = vector.shape_cast %49 : vector<8x8xf32> to vector<1x8x8xf32>
    "tpu.trace_start"() <{level = 10 : i32, message = "blk,bmk->blm"}> : () -> ()
    %cst_16 = arith.constant dense<0.000000e+00> : vector<1x8x8xf32>
    %51 = tpu.matmul %46, %48, %cst_16 {dimension_numbers = #tpu.dot_dimension_numbers<[2], [2], [1], [1], [0, 0, 0, 1, 1, 1], [0], [0]>} : vector<1x8x8xf32>, vector<1x8x8xf32>, vector<1x8x8xf32> -> vector<1x8x8xf32>
    "tpu.trace_stop"() : () -> ()
    %cst_17 = arith.constant 0.353553385 : f32
    %52 = vector.broadcast %cst_17 : f32 to vector<1x8x8xf32>
    %53 = arith.mulf %51, %52 : vector<1x8x8xf32>
    %cst_18 = arith.constant dense<0xFF800000> : vector<1x8xf32>
    %54 = vector.multi_reduction <maximumf>, %53, %cst_18 [2] : vector<1x8x8xf32> to vector<1x8xf32>
    %55 = vector.shape_cast %54 : vector<1x8xf32> to vector<1x8x1xf32>
    %56 = vector.broadcast %55 : vector<1x8x1xf32> to vector<1x8x8xf32>
    %57 = arith.subf %53, %56 : vector<1x8x8xf32>
    %58 = math.exp %57 : vector<1x8x8xf32>
    %cst_19 = arith.constant dense<0.000000e+00> : vector<1x8xf32>
    %59 = vector.multi_reduction <add>, %58, %cst_19 [2] : vector<1x8x8xf32> to vector<1x8xf32>
    %60 = vector.shape_cast %59 : vector<1x8xf32> to vector<1x8x1xf32>
    %61 = tpu.reciprocal %60 {approx = true} : vector<1x8x1xf32> -> vector<1x8x1xf32>
    %62 = vector.broadcast %61 : vector<1x8x1xf32> to vector<1x8x8xf32>
    %63 = arith.mulf %58, %62 : vector<1x8x8xf32>
    "tpu.trace_start"() <{level = 10 : i32, message = "blj,bmj->blm"}> : () -> ()
    %cst_20 = arith.constant dense<0.000000e+00> : vector<1x8x8xf32>
    %64 = tpu.matmul %63, %50, %cst_20 {dimension_numbers = #tpu.dot_dimension_numbers<[2], [2], [1], [1], [0, 0, 0, 1, 1, 1], [0], [0]>} : vector<1x8x8xf32>, vector<1x8x8xf32>, vector<1x8x8xf32> -> vector<1x8x8xf32>
    "tpu.trace_stop"() : () -> ()
    %65 = vector.extract_strided_slice %4 {offsets = [0, 24], sizes = [8, 8], strides = [1, 1]} : vector<8x96xf32> to vector<8x8xf32>
    %66 = vector.shape_cast %65 : vector<8x8xf32> to vector<1x8x8xf32>
    %67 = vector.extract_strided_slice %4 {offsets = [0, 56], sizes = [8, 8], strides = [1, 1]} : vector<8x96xf32> to vector<8x8xf32>
    %68 = vector.shape_cast %67 : vector<8x8xf32> to vector<1x8x8xf32>
    %69 = vector.extract_strided_slice %4 {offsets = [0, 88], sizes = [8, 8], strides = [1, 1]} : vector<8x96xf32> to vector<8x8xf32>
    %70 = vector.shape_cast %69 : vector<8x8xf32> to vector<1x8x8xf32>
    "tpu.trace_start"() <{level = 10 : i32, message = "blk,bmk->blm"}> : () -> ()
    %cst_21 = arith.constant dense<0.000000e+00> : vector<1x8x8xf32>
    %71 = tpu.matmul %66, %68, %cst_21 {dimension_numbers = #tpu.dot_dimension_numbers<[2], [2], [1], [1], [0, 0, 0, 1, 1, 1], [0], [0]>} : vector<1x8x8xf32>, vector<1x8x8xf32>, vector<1x8x8xf32> -> vector<1x8x8xf32>
    "tpu.trace_stop"() : () -> ()
    %cst_22 = arith.constant 0.353553385 : f32
    %72 = vector.broadcast %cst_22 : f32 to vector<1x8x8xf32>
    %73 = arith.mulf %71, %72 : vector<1x8x8xf32>
    %cst_23 = arith.constant dense<0xFF800000> : vector<1x8xf32>
    %74 = vector.multi_reduction <maximumf>, %73, %cst_23 [2] : vector<1x8x8xf32> to vector<1x8xf32>
    %75 = vector.shape_cast %74 : vector<1x8xf32> to vector<1x8x1xf32>
    %76 = vector.broadcast %75 : vector<1x8x1xf32> to vector<1x8x8xf32>
    %77 = arith.subf %73, %76 : vector<1x8x8xf32>
    %78 = math.exp %77 : vector<1x8x8xf32>
    %cst_24 = arith.constant dense<0.000000e+00> : vector<1x8xf32>
    %79 = vector.multi_reduction <add>, %78, %cst_24 [2] : vector<1x8x8xf32> to vector<1x8xf32>
    %80 = vector.shape_cast %79 : vector<1x8xf32> to vector<1x8x1xf32>
    %81 = tpu.reciprocal %80 {approx = true} : vector<1x8x1xf32> -> vector<1x8x1xf32>
    %82 = vector.broadcast %81 : vector<1x8x1xf32> to vector<1x8x8xf32>
    %83 = arith.mulf %78, %82 : vector<1x8x8xf32>
    "tpu.trace_start"() <{level = 10 : i32, message = "blj,bmj->blm"}> : () -> ()
    %cst_25 = arith.constant dense<0.000000e+00> : vector<1x8x8xf32>
    %84 = tpu.matmul %83, %70, %cst_25 {dimension_numbers = #tpu.dot_dimension_numbers<[2], [2], [1], [1], [0, 0, 0, 1, 1, 1], [0], [0]>} : vector<1x8x8xf32>, vector<1x8x8xf32>, vector<1x8x8xf32> -> vector<1x8x8xf32>
    "tpu.trace_stop"() : () -> ()
    %85 = tpu.concatenate %24, %44, %64, %84 in 2 : vector<1x8x8xf32>, vector<1x8x8xf32>, vector<1x8x8xf32>, vector<1x8x8xf32> -> vector<1x8x32xf32>
    %86 = vector.shape_cast %85 : vector<1x8x32xf32> to vector<8x32xf32>
    %cst_26 = arith.constant dense<0.000000e+00> : vector<8x32xf32>
    %87 = tpu.matmul %86, %1, %cst_26 {dimension_numbers = #tpu.dot_dimension_numbers<[1], [1], [0], [0], [0, 0, 1, 0], [], []>} : vector<8x32xf32>, vector<32x32xf32>, vector<8x32xf32> -> vector<8x32xf32>
    %88 = vector.shape_cast %87 : vector<8x32xf32> to vector<1x8x32xf32>
    %c0_27 = arith.constant 0 : index
    %c0_28 = arith.constant 0 : index
    %c0_29 = arith.constant 0 : index
    %89 = vector.load %arg4[%c0_27, %c0_28, %c0_29] : memref<1x8x32xf32, #tpu.memory_space<vmem>>, vector<1x8x32xf32>
    tpu.vector_store %arg4[%c0_27, %c0_28, %c0_29], %88 {strides = array<i32>} : memref<1x8x32xf32, #tpu.memory_space<vmem>>, vector<1x8x32xf32>,
    return
  }
  func.func @transform_0(%arg0: i32) -> (i32, i32, i32) {
    %c0_i32 = arith.constant 0 : i32
    %c0_i32_0 = arith.constant 0 : i32
    %c0_i32_1 = arith.constant 0 : i32
    return %arg0, %c0_i32, %c0_i32_0 : i32, i32, i32
  }
  func.func @transform_1(%arg0: i32) -> (i32, i32) {
    %c0_i32 = arith.constant 0 : i32
    %c0_i32_0 = arith.constant 0 : i32
    %c0_i32_1 = arith.constant 0 : i32
    return %c0_i32, %c0_i32_0 : i32, i32
  }
  func.func @transform_2(%arg0: i32) -> (i32, i32) {
    %c0_i32 = arith.constant 0 : i32
    %c0_i32_0 = arith.constant 0 : i32
    %c0_i32_1 = arith.constant 0 : i32
    return %c0_i32, %c0_i32_0 : i32, i32
  }
  func.func @transform_3(%arg0: i32) -> (i32, i32, i32) {
    %c0_i32 = arith.constant 0 : i32
    %c0_i32_0 = arith.constant 0 : i32
    %c0_i32_1 = arith.constant 0 : i32
    return %arg0, %c0_i32, %c0_i32_0 : i32, i32, i32
  }
}

</mosaic_0001>

<llo_original>
// kernel: tpu_custom_call.1
$region0: #{tpu_custom_call.1}
  #allocation0 [shape = 'u32[]', space=smem, size = 0x4, offset = 0x4, fixed_abs, tag = 'smem constant byte address 0x4 - core index']
  #allocation1 [shape = 'u32[144,128]{1,0:T(1,128)}', space=vmem, size = 0x12000, scoped, tag = 'internal scratch']
  %s0 = inlined_call_operand.vmem [shape: f32[1,8,32], index: 0, kind: input, shape index: {}]
  %s1 = inlined_call_operand.vmem [shape: f32[96,32], index: 1, kind: input, shape index: {}]
  %s2 = inlined_call_operand.vmem [shape: f32[32,32], index: 2, kind: input, shape index: {}]
  %s3 = inlined_call_operand.hbm [shape: f32[1,8,32], index: 3, kind: output, shape index: {}]
  %s4 = sld [smem:[#allocation0]]
  $region22: #{tpu_custom_call.1} parent=0
    _
  %s6 = ssub.s32 1, %s4
  %s7 = scalar_select 0, %s6, %s4
  $region1: #{tpu_custom_call.1} parent=0
    #allocation2 [shape = 'u8[4096]{0}', space=vmem, size = 0x1000, scoped, tag = 'output window, operand 0, single buffered']
    #allocation3 [shape = 's32[1]{0}', space=sflag, size = 0x4, scoped, tag = 'scoped memory for tpu_custom_call.1']
    %8 = vsyncpa [#allocation3], 0
    // Predicated region
    $region2: #{tpu_custom_call.1} parent=1 // pred_check
      _
    $region3: #{tpu_custom_call.1} parent=1 // pred_check_branch
      %10 = sbr.rel (0) target = $region5
    $region4: #{tpu_custom_call.1} parent=1 // pred_region
      _
    $region5: #{tpu_custom_call.1} parent=1 // pred_fallthru
      _
    // Predicated region
    $region6: #{tpu_custom_call.1} parent=1 // pred_check
      _
    $region7: #{tpu_custom_call.1} parent=1 // pred_check_branch
      %12 = sbr.rel (0) target = $region9
    $region8: #{tpu_custom_call.1} parent=1 // pred_region
      _
    $region9: #{tpu_custom_call.1} parent=1 // pred_fallthru
      _
    // Predicated region
    $region10: #{tpu_custom_call.1} parent=1 // pred_check
      _
    $region11: #{tpu_custom_call.1} parent=1 // pred_check_branch
      %14 = sbr.rel (0) target = $region13
    $region12: #{tpu_custom_call.1} parent=1 // pred_region
      _
    $region13: #{tpu_custom_call.1} parent=1 // pred_fallthru
      _
    %v15 = vld [vmem:[%s1] sm:$0xff]
    %v16 = vld [vmem:[%s1 + $0x8] sm:$0xff]
    %v17 = vld [vmem:[%s1 + $0x10] sm:$0xff]
    %v18 = vld [vmem:[%s1 + $0x18] sm:$0xff]
    %v19 = vld [vmem:[%s1 + $0x20] sm:$0xff]
    %v20 = vld [vmem:[%s1 + $0x28] sm:$0xff]
    %v21 = vld [vmem:[%s1 + $0x30] sm:$0xff]
    %v22 = vld [vmem:[%s1 + $0x38] sm:$0xff]
    %v23 = vld [vmem:[%s1 + $0x40] sm:$0xff]
    %v24 = vld [vmem:[%s1 + $0x48] sm:$0xff]
    %v25 = vld [vmem:[%s1 + $0x50] sm:$0xff]
    %v26 = vld [vmem:[%s1 + $0x58] sm:$0xff]
    %v27 = vld [vmem:[%s2] sm:$0xff]
    %v28 = vld [vmem:[%s2 + $0x8] sm:$0xff]
    %v29 = vld [vmem:[%s2 + $0x10] sm:$0xff]
    %v30 = vld [vmem:[%s2 + $0x18] sm:$0xff]
    %v31 = vld [vmem:[%s0] sm:$0xff]
    %vm32 = vcmask 261120
    %v34 = vsel %vm32, %v31, 0
    %v37 = vsel %vm32, %v15, 0
    %v40 = vsel %vm32, %v16, 0
    %v43 = vsel %vm32, %v17, 0
    %v46 = vsel %vm32, %v18, 0
    %v49 = vsel %vm32, %v19, 0
    %v52 = vsel %vm32, %v20, 0
    %v55 = vsel %vm32, %v21, 0
    %v58 = vsel %vm32, %v22, 0
    %v61 = vsel %vm32, %v23, 0
    %v64 = vsel %vm32, %v24, 0
    %v67 = vsel %vm32, %v25, 0
    %v70 = vsel %vm32, %v26, 0
    %72 = vmatprep.subr.mxu0 0.0
    %73 = vmatpush1.xpose.msra.mxu0 0.0
    %74 = vmatprep.subr.mxu0 0.0
    %75 = vmatpush1.xpose.msra.mxu0 0.0
    %76 = vmatprep.subr.mxu0 0.0
    %77 = vmatpush1.xpose.msra.mxu0 0.0
    %78 = vmatprep.subr.mxu0 0.0
    %79 = vmatpush1.xpose.msra.mxu0 0.0
    %80 = vmatprep.subr.mxu0 0.0
    %81 = vmatpush1.xpose.msra.mxu0 %v70
    %82 = vmatprep.subr.mxu0 0.0
    %83 = vmatpush1.xpose.msra.mxu0 %v67
    %84 = vmatprep.subr.mxu0 0.0
    %85 = vmatpush1.xpose.msra.mxu0 %v64
    %86 = vmatprep.subr.mxu0 0.0
    %87 = vmatpush1.xpose.msra.mxu0 %v61
    %88 = vmatprep.subr.mxu0 0.0
    %89 = vmatpush1.xpose.msra.mxu0 %v58
    %90 = vmatprep.subr.mxu0 0.0
    %91 = vmatpush1.xpose.msra.mxu0 %v55
    %92 = vmatprep.subr.mxu0 0.0
    %93 = vmatpush1.xpose.msra.mxu0 %v52
    %94 = vmatprep.subr.mxu0 0.0
    %95 = vmatpush1.xpose.msra.mxu0 %v49
    %96 = vmatprep.subr.mxu0 0.0
    %97 = vmatpush1.xpose.msra.mxu0 %v46
    %98 = vmatprep.subr.mxu0 0.0
    %99 = vmatpush1.xpose.msra.mxu0 %v43
    %100 = vmatprep.subr.mxu0 0.0
    %101 = vmatpush1.xpose.msra.mxu0 %v40
    %102 = vmatprep.subr.mxu0 0.0
    %103 = vmatpush1.xpose.msra.mxu0 %v37
    %104 = vmatprep.subr.mxu0 0.0
    %105 = vmatpush2.xpose.msra.mxu0 0.0
    %106 = vmatprep.subr.mxu0 0.0
    %107 = vmatpush2.xpose.msra.mxu0 0.0
    %108 = vmatprep.subr.mxu0 0.0
    %109 = vmatpush2.xpose.msra.mxu0 0.0
    %110 = vmatprep.subr.mxu0 0.0
    %111 = vmatpush2.xpose.msra.mxu0 0.0
    %112 = vmatprep.subr.mxu0 0.0
    %113 = vmatpush2.xpose.msra.mxu0 0.0
    %114 = vmatprep.subr.mxu0 0.0
    %115 = vmatpush2.xpose.msra.mxu0 0.0
    %116 = vmatprep.subr.mxu0 0.0
    %117 = vmatpush2.xpose.msra.mxu0 0.0
    %118 = vmatprep.subr.mxu0 0.0
    %119 = vmatpush2.xpose.msra.mxu0 0.0
    %120 = vmatprep.subr.mxu0 0.0
    %121 = vmatpush2.xpose.msra.mxu0 0.0
    %122 = vmatprep.subr.mxu0 0.0
    %123 = vmatpush2.xpose.msra.mxu0 0.0
    %124 = vmatprep.subr.mxu0 0.0
    %125 = vmatpush2.xpose.msra.mxu0 0.0
    %126 = vmatprep.subr.mxu0 0.0
    %127 = vmatpush2.xpose.msra.mxu0 0.0
    %128 = vmatprep.subr.mxu0 0.0
    %129 = vmatpush2.xpose.msra.mxu0 0.0
    %130 = vmatprep.subr.mxu0 0.0
    %131 = vmatpush2.xpose.msra.mxu0 0.0
    %132 = vmatprep.subr.mxu0 0.0
    %133 = vmatpush2.xpose.msra.mxu0 0.0
    %134 = vmatprep.subr.mxu0 0.0
    %135 = vmatpush2.xpose.msra.mxu0 0.0
    %136 = vmatprep.mubr.f32.mxu0 0.0
    %137 = vmatmul.mubr.f32.gmra.mxu0 %v34
    %v138 = vpop.f32.mrf.mxu0
    %v139 = vadd.f32 0.0, %v138
    %v140 = vpop.f32.mrf.mxu0
    %141 = vdwg.mxu0
    %143 = vrot.lane.b32.xlu0 %v139, 96
    %v144 = vpop.permute.xlu0 %143
    %vm145 = vcmask 64512
    %v146 = vsel %vm145, %v139, 0
    %v148 = vsel %vm145, %v144, 0
    %150 = vmatprep.subr.mxu0 0.0
    %151 = vmatpush1.xpose.msra.mxu0 0.0
    %152 = vmatprep.subr.mxu0 0.0
    %153 = vmatpush1.xpose.msra.mxu0 0.0
    %154 = vmatprep.subr.mxu0 0.0
    %155 = vmatpush1.xpose.msra.mxu0 0.0
    %156 = vmatprep.subr.mxu0 0.0
    %157 = vmatpush1.xpose.msra.mxu0 0.0
    %158 = vmatprep.subr.mxu0 0.0
    %159 = vmatpush1.xpose.msra.mxu0 0.0
    %160 = vmatprep.subr.mxu0 0.0
    %161 = vmatpush1.xpose.msra.mxu0 0.0
    %162 = vmatprep.subr.mxu0 0.0
    %163 = vmatpush1.xpose.msra.mxu0 0.0
    %164 = vmatprep.subr.mxu0 0.0
    %165 = vmatpush1.xpose.msra.mxu0 0.0
    %166 = vmatprep.subr.mxu0 0.0
    %167 = vmatpush1.xpose.msra.mxu0 0.0
    %168 = vmatprep.subr.mxu0 0.0
    %169 = vmatpush1.xpose.msra.mxu0 0.0
    %170 = vmatprep.subr.mxu0 0.0
    %171 = vmatpush1.xpose.msra.mxu0 0.0
    %172 = vmatprep.subr.mxu0 0.0
    %173 = vmatpush1.xpose.msra.mxu0 0.0
    %174 = vmatprep.subr.mxu0 0.0
    %175 = vmatpush1.xpose.msra.mxu0 0.0
    %176 = vmatprep.subr.mxu0 0.0
    %177 = vmatpush1.xpose.msra.mxu0 0.0
    %178 = vmatprep.subr.mxu0 0.0
    %179 = vmatpush1.xpose.msra.mxu0 0.0
    %180 = vmatprep.subr.mxu0 0.0
    %181 = vmatpush1.xpose.msra.mxu0 %v148
    %182 = vmatprep.subr.mxu0 0.0
    %183 = vmatpush2.xpose.msra.mxu0 0.0
    %184 = vmatprep.subr.mxu0 0.0
    %185 = vmatpush2.xpose.msra.mxu0 0.0
    %186 = vmatprep.subr.mxu0 0.0
    %187 = vmatpush2.xpose.msra.mxu0 0.0
    %188 = vmatprep.subr.mxu0 0.0
    %189 = vmatpush2.xpose.msra.mxu0 0.0
    %190 = vmatprep.subr.mxu0 0.0
    %191 = vmatpush2.xpose.msra.mxu0 0.0
    %192 = vmatprep.subr.mxu0 0.0
    %193 = vmatpush2.xpose.msra.mxu0 0.0
    %194 = vmatprep.subr.mxu0 0.0
    %195 = vmatpush2.xpose.msra.mxu0 0.0
    %196 = vmatprep.subr.mxu0 0.0
    %197 = vmatpush2.xpose.msra.mxu0 0.0
    %198 = vmatprep.subr.mxu0 0.0
    %199 = vmatpush2.xpose.msra.mxu0 0.0
    %200 = vmatprep.subr.mxu0 0.0
    %201 = vmatpush2.xpose.msra.mxu0 0.0
    %202 = vmatprep.subr.mxu0 0.0
    %203 = vmatpush2.xpose.msra.mxu0 0.0
    %204 = vmatprep.subr.mxu0 0.0
    %205 = vmatpush2.xpose.msra.mxu0 0.0
    %206 = vmatprep.subr.mxu0 0.0
    %207 = vmatpush2.xpose.msra.mxu0 0.0
    %208 = vmatprep.subr.mxu0 0.0
    %209 = vmatpush2.xpose.msra.mxu0 0.0
    %210 = vmatprep.subr.mxu0 0.0
    %211 = vmatpush2.xpose.msra.mxu0 0.0
    %212 = vmatprep.subr.mxu0 0.0
    %213 = vmatpush2.xpose.msra.mxu0 0.0
    %214 = vmatprep.mubr.f32.mxu0 0.0
    %215 = vmatmul.mubr.f32.gmra.mxu0 %v146
    %v216 = vpop.f32.mrf.mxu0
    %v217 = vadd.f32 0.0, %v216
    %v218 = vpop.f32.mrf.mxu0
    %219 = vdwg.mxu0
    %v220 = vmul.f32 %v217, 0.35355338
    %v221 = vsel %vm145, %v220, -inf
    %222 = vmax.xlane.f32.xlu0 %v221
    %v223 = vpop.xlane.xlu0 %222
    %v224 = vsub.f32 %v220, %v223
    %v225 = vmul.f32 %v224, 1.442695
    %v226 = vpow.pop %v225
    %v227 = vsel %vm145, %v226, 0.0
    %228 = vadd.xlane.f32.xlu0 %v227
    %v229 = vpop.xlane.xlu0 %228
    %v230 = vrcp.pop %v229
    %v231 = vmul.f32 %v226, %v230
    %232 = vrot.lane.b32.xlu0 %v139, 64
    %v233 = vpop.permute.xlu0 %232
    %v235 = vsel %vm145, %v231, 0
    %v237 = vsel %vm145, %v233, 0
    %239 = vmatprep.subr.mxu0 0.0
    %240 = vmatpush1.xpose.msra.mxu0 0.0
    %241 = vmatprep.subr.mxu0 0.0
    %242 = vmatpush1.xpose.msra.mxu0 0.0
    %243 = vmatprep.subr.mxu0 0.0
    %244 = vmatpush1.xpose.msra.mxu0 0.0
    %245 = vmatprep.subr.mxu0 0.0
    %246 = vmatpush1.xpose.msra.mxu0 0.0
    %247 = vmatprep.subr.mxu0 0.0
    %248 = vmatpush1.xpose.msra.mxu0 0.0
    %249 = vmatprep.subr.mxu0 0.0
    %250 = vmatpush1.xpose.msra.mxu0 0.0
    %251 = vmatprep.subr.mxu0 0.0
    %252 = vmatpush1.xpose.msra.mxu0 0.0
    %253 = vmatprep.subr.mxu0 0.0
    %254 = vmatpush1.xpose.msra.mxu0 0.0
    %255 = vmatprep.subr.mxu0 0.0
    %256 = vmatpush1.xpose.msra.mxu0 0.0
    %257 = vmatprep.subr.mxu0 0.0
    %258 = vmatpush1.xpose.msra.mxu0 0.0
    %259 = vmatprep.subr.mxu0 0.0
    %260 = vmatpush1.xpose.msra.mxu0 0.0
    %261 = vmatprep.subr.mxu0 0.0
    %262 = vmatpush1.xpose.msra.mxu0 0.0
    %263 = vmatprep.subr.mxu0 0.0
    %264 = vmatpush1.xpose.msra.mxu0 0.0
    %265 = vmatprep.subr.mxu0 0.0
    %266 = vmatpush1.xpose.msra.mxu0 0.0
    %267 = vmatprep.subr.mxu0 0.0
    %268 = vmatpush1.xpose.msra.mxu0 0.0
    %269 = vmatprep.subr.mxu0 0.0
    %270 = vmatpush1.xpose.msra.mxu0 %v237
    %271 = vmatprep.subr.mxu0 0.0
    %272 = vmatpush2.xpose.msra.mxu0 0.0
    %273 = vmatprep.subr.mxu0 0.0
    %274 = vmatpush2.xpose.msra.mxu0 0.0
    %275 = vmatprep.subr.mxu0 0.0
    %276 = vmatpush2.xpose.msra.mxu0 0.0
    %277 = vmatprep.subr.mxu0 0.0
    %278 = vmatpush2.xpose.msra.mxu0 0.0
    %279 = vmatprep.subr.mxu0 0.0
    %280 = vmatpush2.xpose.msra.mxu0 0.0
    %281 = vmatprep.subr.mxu0 0.0
    %282 = vmatpush2.xpose.msra.mxu0 0.0
    %283 = vmatprep.subr.mxu0 0.0
    %284 = vmatpush2.xpose.msra.mxu0 0.0
    %285 = vmatprep.subr.mxu0 0.0
    %286 = vmatpush2.xpose.msra.mxu0 0.0
    %287 = vmatprep.subr.mxu0 0.0
    %288 = vmatpush2.xpose.msra.mxu0 0.0
    %289 = vmatprep.subr.mxu0 0.0
    %290 = vmatpush2.xpose.msra.mxu0 0.0
    %291 = vmatprep.subr.mxu0 0.0
    %292 = vmatpush2.xpose.msra.mxu0 0.0
    %293 = vmatprep.subr.mxu0 0.0
    %294 = vmatpush2.xpose.msra.mxu0 0.0
    %295 = vmatprep.subr.mxu0 0.0
    %296 = vmatpush2.xpose.msra.mxu0 0.0
    %297 = vmatprep.subr.mxu0 0.0
    %298 = vmatpush2.xpose.msra.mxu0 0.0
    %299 = vmatprep.subr.mxu0 0.0
    %300 = vmatpush2.xpose.msra.mxu0 0.0
    %301 = vmatprep.subr.mxu0 0.0
    %302 = vmatpush2.xpose.msra.mxu0 0.0
    %303 = vmatprep.mubr.f32.mxu0 0.0
    %304 = vmatmul.mubr.f32.gmra.mxu0 %v235
    %v305 = vpop.f32.mrf.mxu0
    %v306 = vadd.f32 0.0, %v305
    %v307 = vpop.f32.mrf.mxu0
    %308 = vdwg.mxu0
    %309 = vrot.lane.b32.xlu0 %v139, 120
    %v310 = vpop.permute.xlu0 %309
    %311 = vrot.lane.b32.xlu0 %v139, 88
    %v312 = vpop.permute.xlu0 %311
    %v313 = vsel %vm145, %v310, 0
    %v315 = vsel %vm145, %v312, 0
    %317 = vmatprep.subr.mxu0 0.0
    %318 = vmatpush1.xpose.msra.mxu0 0.0
    %319 = vmatprep.subr.mxu0 0.0
    %320 = vmatpush1.xpose.msra.mxu0 0.0
    %321 = vmatprep.subr.mxu0 0.0
    %322 = vmatpush1.xpose.msra.mxu0 0.0
    %323 = vmatprep.subr.mxu0 0.0
    %324 = vmatpush1.xpose.msra.mxu0 0.0
    %325 = vmatprep.subr.mxu0 0.0
    %326 = vmatpush1.xpose.msra.mxu0 0.0
    %327 = vmatprep.subr.mxu0 0.0
    %328 = vmatpush1.xpose.msra.mxu0 0.0
    %329 = vmatprep.subr.mxu0 0.0
    %330 = vmatpush1.xpose.msra.mxu0 0.0
    %331 = vmatprep.subr.mxu0 0.0
    %332 = vmatpush1.xpose.msra.mxu0 0.0
    %333 = vmatprep.subr.mxu0 0.0
    %334 = vmatpush1.xpose.msra.mxu0 0.0
    %335 = vmatprep.subr.mxu0 0.0
    %336 = vmatpush1.xpose.msra.mxu0 0.0
    %337 = vmatprep.subr.mxu0 0.0
    %338 = vmatpush1.xpose.msra.mxu0 0.0
    %339 = vmatprep.subr.mxu0 0.0
    %340 = vmatpush1.xpose.msra.mxu0 0.0
    %341 = vmatprep.subr.mxu0 0.0
    %342 = vmatpush1.xpose.msra.mxu0 0.0
    %343 = vmatprep.subr.mxu0 0.0
    %344 = vmatpush1.xpose.msra.mxu0 0.0
    %345 = vmatprep.subr.mxu0 0.0
    %346 = vmatpush1.xpose.msra.mxu0 0.0
    %347 = vmatprep.subr.mxu0 0.0
    %348 = vmatpush1.xpose.msra.mxu0 %v315
    %349 = vmatprep.subr.mxu0 0.0
    %350 = vmatpush2.xpose.msra.mxu0 0.0
    %351 = vmatprep.subr.mxu0 0.0
    %352 = vmatpush2.xpose.msra.mxu0 0.0
    %353 = vmatprep.subr.mxu0 0.0
    %354 = vmatpush2.xpose.msra.mxu0 0.0
    %355 = vmatprep.subr.mxu0 0.0
    %356 = vmatpush2.xpose.msra.mxu0 0.0
    %357 = vmatprep.subr.mxu0 0.0
    %358 = vmatpush2.xpose.msra.mxu0 0.0
    %359 = vmatprep.subr.mxu0 0.0
    %360 = vmatpush2.xpose.msra.mxu0 0.0
    %361 = vmatprep.subr.mxu0 0.0
    %362 = vmatpush2.xpose.msra.mxu0 0.0
    %363 = vmatprep.subr.mxu0 0.0
    %364 = vmatpush2.xpose.msra.mxu0 0.0
    %365 = vmatprep.subr.mxu0 0.0
    %366 = vmatpush2.xpose.msra.mxu0 0.0
    %367 = vmatprep.subr.mxu0 0.0
    %368 = vmatpush2.xpose.msra.mxu0 0.0
    %369 = vmatprep.subr.mxu0 0.0
    %370 = vmatpush2.xpose.msra.mxu0 0.0
    %371 = vmatprep.subr.mxu0 0.0
    %372 = vmatpush2.xpose.msra.mxu0 0.0
    %373 = vmatprep.subr.mxu0 0.0
    %374 = vmatpush2.xpose.msra.mxu0 0.0
    %375 = vmatprep.subr.mxu0 0.0
    %376 = vmatpush2.xpose.msra.mxu0 0.0
    %377 = vmatprep.subr.mxu0 0.0
    %378 = vmatpush2.xpose.msra.mxu0 0.0
    %379 = vmatprep.subr.mxu0 0.0
    %380 = vmatpush2.xpose.msra.mxu0 0.0
    %381 = vmatprep.mubr.f32.mxu0 0.0
    %382 = vmatmul.mubr.f32.gmra.mxu0 %v313
    %v383 = vpop.f32.mrf.mxu0
    %v384 = vadd.f32 0.0, %v383
    %v385 = vpop.f32.mrf.mxu0
    %386 = vdwg.mxu0
    %v387 = vmul.f32 %v384, 0.35355338
    %v388 = vsel %vm145, %v387, -inf
    %389 = vmax.xlane.f32.xlu0 %v388
    %v390 = vpop.xlane.xlu0 %389
    %v391 = vsub.f32 %v387, %v390
    %v392 = vmul.f32 %v391, 1.442695
    %v393 = vpow.pop %v392
    %v394 = vsel %vm145, %v393, 0.0
    %395 = vadd.xlane.f32.xlu0 %v394
    %v396 = vpop.xlane.xlu0 %395
    %v397 = vrcp.pop %v396
    %v398 = vmul.f32 %v393, %v397
    %399 = vrot.lane.b32.xlu0 %v139, 56
    %v400 = vpop.permute.xlu0 %399
    %v402 = vsel %vm145, %v398, 0
    %v404 = vsel %vm145, %v400, 0
    %406 = vmatprep.subr.mxu0 0.0
    %407 = vmatpush1.xpose.msra.mxu0 0.0
    %408 = vmatprep.subr.mxu0 0.0
    %409 = vmatpush1.xpose.msra.mxu0 0.0
    %410 = vmatprep.subr.mxu0 0.0
    %411 = vmatpush1.xpose.msra.mxu0 0.0
    %412 = vmatprep.subr.mxu0 0.0
    %413 = vmatpush1.xpose.msra.mxu0 0.0
    %414 = vmatprep.subr.mxu0 0.0
    %415 = vmatpush1.xpose.msra.mxu0 0.0
    %416 = vmatprep.subr.mxu0 0.0
    %417 = vmatpush1.xpose.msra.mxu0 0.0
    %418 = vmatprep.subr.mxu0 0.0
    %419 = vmatpush1.xpose.msra.mxu0 0.0
    %420 = vmatprep.subr.mxu0 0.0
    %421 = vmatpush1.xpose.msra.mxu0 0.0
    %422 = vmatprep.subr.mxu0 0.0
    %423 = vmatpush1.xpose.msra.mxu0 0.0
    %424 = vmatprep.subr.mxu0 0.0
    %425 = vmatpush1.xpose.msra.mxu0 0.0
    %426 = vmatprep.subr.mxu0 0.0
    %427 = vmatpush1.xpose.msra.mxu0 0.0
    %428 = vmatprep.subr.mxu0 0.0
    %429 = vmatpush1.xpose.msra.mxu0 0.0
    %430 = vmatprep.subr.mxu0 0.0
    %431 = vmatpush1.xpose.msra.mxu0 0.0
    %432 = vmatprep.subr.mxu0 0.0
    %433 = vmatpush1.xpose.msra.mxu0 0.0
    %434 = vmatprep.subr.mxu0 0.0
    %435 = vmatpush1.xpose.msra.mxu0 0.0
    %436 = vmatprep.subr.mxu0 0.0
    %437 = vmatpush1.xpose.msra.mxu0 %v404
    %438 = vmatprep.subr.mxu0 0.0
    %439 = vmatpush2.xpose.msra.mxu0 0.0
    %440 = vmatprep.subr.mxu0 0.0
    %441 = vmatpush2.xpose.msra.mxu0 0.0
    %442 = vmatprep.subr.mxu0 0.0
    %443 = vmatpush2.xpose.msra.mxu0 0.0
    %444 = vmatprep.subr.mxu0 0.0
    %445 = vmatpush2.xpose.msra.mxu0 0.0
    %446 = vmatprep.subr.mxu0 0.0
    %447 = vmatpush2.xpose.msra.mxu0 0.0
    %448 = vmatprep.subr.mxu0 0.0
    %449 = vmatpush2.xpose.msra.mxu0 0.0
    %450 = vmatprep.subr.mxu0 0.0
    %451 = vmatpush2.xpose.msra.mxu0 0.0
    %452 = vmatprep.subr.mxu0 0.0
    %453 = vmatpush2.xpose.msra.mxu0 0.0
    %454 = vmatprep.subr.mxu0 0.0
    %455 = vmatpush2.xpose.msra.mxu0 0.0
    %456 = vmatprep.subr.mxu0 0.0
    %457 = vmatpush2.xpose.msra.mxu0 0.0
    %458 = vmatprep.subr.mxu0 0.0
    %459 = vmatpush2.xpose.msra.mxu0 0.0
    %460 = vmatprep.subr.mxu0 0.0
    %461 = vmatpush2.xpose.msra.mxu0 0.0
    %462 = vmatprep.subr.mxu0 0.0
    %463 = vmatpush2.xpose.msra.mxu0 0.0
    %464 = vmatprep.subr.mxu0 0.0
    %465 = vmatpush2.xpose.msra.mxu0 0.0
    %466 = vmatprep.subr.mxu0 0.0
    %467 = vmatpush2.xpose.msra.mxu0 0.0
    %468 = vmatprep.subr.mxu0 0.0
    %469 = vmatpush2.xpose.msra.mxu0 0.0
    %470 = vmatprep.mubr.f32.mxu0 0.0
    %471 = vmatmul.mubr.f32.gmra.mxu0 %v402
    %v472 = vpop.f32.mrf.mxu0
    %v473 = vadd.f32 0.0, %v472
    %v474 = vpop.f32.mrf.mxu0
    %475 = vdwg.mxu0
    %476 = vrot.lane.b32.xlu0 %v139, 112
    %v477 = vpop.permute.xlu0 %476
    %478 = vrot.lane.b32.xlu0 %v139, 80
    %v479 = vpop.permute.xlu0 %478
    %v480 = vsel %vm145, %v477, 0
    %v482 = vsel %vm145, %v479, 0
    %484 = vmatprep.subr.mxu0 0.0
    %485 = vmatpush1.xpose.msra.mxu0 0.0
    %486 = vmatprep.subr.mxu0 0.0
    %487 = vmatpush1.xpose.msra.mxu0 0.0
    %488 = vmatprep.subr.mxu0 0.0
    %489 = vmatpush1.xpose.msra.mxu0 0.0
    %490 = vmatprep.subr.mxu0 0.0
    %491 = vmatpush1.xpose.msra.mxu0 0.0
    %492 = vmatprep.subr.mxu0 0.0
    %493 = vmatpush1.xpose.msra.mxu0 0.0
    %494 = vmatprep.subr.mxu0 0.0
    %495 = vmatpush1.xpose.msra.mxu0 0.0
    %496 = vmatprep.subr.mxu0 0.0
    %497 = vmatpush1.xpose.msra.mxu0 0.0
    %498 = vmatprep.subr.mxu0 0.0
    %499 = vmatpush1.xpose.msra.mxu0 0.0
    %500 = vmatprep.subr.mxu0 0.0
    %501 = vmatpush1.xpose.msra.mxu0 0.0
    %502 = vmatprep.subr.mxu0 0.0
    %503 = vmatpush1.xpose.msra.mxu0 0.0
    %504 = vmatprep.subr.mxu0 0.0
    %505 = vmatpush1.xpose.msra.mxu0 0.0
    %506 = vmatprep.subr.mxu0 0.0
    %507 = vmatpush1.xpose.msra.mxu0 0.0
    %508 = vmatprep.subr.mxu0 0.0
    %509 = vmatpush1.xpose.msra.mxu0 0.0
    %510 = vmatprep.subr.mxu0 0.0
    %511 = vmatpush1.xpose.msra.mxu0 0.0
    %512 = vmatprep.subr.mxu0 0.0
    %513 = vmatpush1.xpose.msra.mxu0 0.0
    %514 = vmatprep.subr.mxu0 0.0
    %515 = vmatpush1.xpose.msra.mxu0 %v482
    %516 = vmatprep.subr.mxu0 0.0
    %517 = vmatpush2.xpose.msra.mxu0 0.0
    %518 = vmatprep.subr.mxu0 0.0
    %519 = vmatpush2.xpose.msra.mxu0 0.0
    %520 = vmatprep.subr.mxu0 0.0
    %521 = vmatpush2.xpose.msra.mxu0 0.0
    %522 = vmatprep.subr.mxu0 0.0
    %523 = vmatpush2.xpose.msra.mxu0 0.0
    %524 = vmatprep.subr.mxu0 0.0
    %525 = vmatpush2.xpose.msra.mxu0 0.0
    %526 = vmatprep.subr.mxu0 0.0
    %527 = vmatpush2.xpose.msra.mxu0 0.0
    %528 = vmatprep.subr.mxu0 0.0
    %529 = vmatpush2.xpose.msra.mxu0 0.0
    %530 = vmatprep.subr.mxu0 0.0
    %531 = vmatpush2.xpose.msra.mxu0 0.0
    %532 = vmatprep.subr.mxu0 0.0
    %533 = vmatpush2.xpose.msra.mxu0 0.0
    %534 = vmatprep.subr.mxu0 0.0
    %535 = vmatpush2.xpose.msra.mxu0 0.0
    %536 = vmatprep.subr.mxu0 0.0
    %537 = vmatpush2.xpose.msra.mxu0 0.0
    %538 = vmatprep.subr.mxu0 0.0
    %539 = vmatpush2.xpose.msra.mxu0 0.0
    %540 = vmatprep.subr.mxu0 0.0
    %541 = vmatpush2.xpose.msra.mxu0 0.0
    %542 = vmatprep.subr.mxu0 0.0
    %543 = vmatpush2.xpose.msra.mxu0 0.0
    %544 = vmatprep.subr.mxu0 0.0
    %545 = vmatpush2.xpose.msra.mxu0 0.0
    %546 = vmatprep.subr.mxu0 0.0
    %547 = vmatpush2.xpose.msra.mxu0 0.0
    %548 = vmatprep.mubr.f32.mxu0 0.0
    %549 = vmatmul.mubr.f32.gmra.mxu0 %v480
    %v550 = vpop.f32.mrf.mxu0
    %v551 = vadd.f32 0.0, %v550
    %v552 = vpop.f32.mrf.mxu0
    %553 = vdwg.mxu0
    %v554 = vmul.f32 %v551, 0.35355338
    %v555 = vsel %vm145, %v554, -inf
    %556 = vmax.xlane.f32.xlu0 %v555
    %v557 = vpop.xlane.xlu0 %556
    %v558 = vsub.f32 %v554, %v557
    %v559 = vmul.f32 %v558, 1.442695
    %v560 = vpow.pop %v559
    %v561 = vsel %vm145, %v560, 0.0
    %562 = vadd.xlane.f32.xlu0 %v561
    %v563 = vpop.xlane.xlu0 %562
    %v564 = vrcp.pop %v563
    %v565 = vmul.f32 %v560, %v564
    %566 = vrot.lane.b32.xlu0 %v139, 48
    %v567 = vpop.permute.xlu0 %566
    %v569 = vsel %vm145, %v565, 0
    %v571 = vsel %vm145, %v567, 0
    %573 = vmatprep.subr.mxu0 0.0
    %574 = vmatpush1.xpose.msra.mxu0 0.0
    %575 = vmatprep.subr.mxu0 0.0
    %576 = vmatpush1.xpose.msra.mxu0 0.0
    %577 = vmatprep.subr.mxu0 0.0
    %578 = vmatpush1.xpose.msra.mxu0 0.0
    %579 = vmatprep.subr.mxu0 0.0
    %580 = vmatpush1.xpose.msra.mxu0 0.0
    %581 = vmatprep.subr.mxu0 0.0
    %582 = vmatpush1.xpose.msra.mxu0 0.0
    %583 = vmatprep.subr.mxu0 0.0
    %584 = vmatpush1.xpose.msra.mxu0 0.0
    %585 = vmatprep.subr.mxu0 0.0
    %586 = vmatpush1.xpose.msra.mxu0 0.0
    %587 = vmatprep.subr.mxu0 0.0
    %588 = vmatpush1.xpose.msra.mxu0 0.0
    %589 = vmatprep.subr.mxu0 0.0
    %590 = vmatpush1.xpose.msra.mxu0 0.0
    %591 = vmatprep.subr.mxu0 0.0
    %592 = vmatpush1.xpose.msra.mxu0 0.0
    %593 = vmatprep.subr.mxu0 0.0
    %594 = vmatpush1.xpose.msra.mxu0 0.0
    %595 = vmatprep.subr.mxu0 0.0
    %596 = vmatpush1.xpose.msra.mxu0 0.0
    %597 = vmatprep.subr.mxu0 0.0
    %598 = vmatpush1.xpose.msra.mxu0 0.0
    %599 = vmatprep.subr.mxu0 0.0
    %600 = vmatpush1.xpose.msra.mxu0 0.0
    %601 = vmatprep.subr.mxu0 0.0
    %602 = vmatpush1.xpose.msra.mxu0 0.0
    %603 = vmatprep.subr.mxu0 0.0
    %604 = vmatpush1.xpose.msra.mxu0 %v571
    %605 = vmatprep.subr.mxu0 0.0
    %606 = vmatpush2.xpose.msra.mxu0 0.0
    %607 = vmatprep.subr.mxu0 0.0
    %608 = vmatpush2.xpose.msra.mxu0 0.0
    %609 = vmatprep.subr.mxu0 0.0
    %610 = vmatpush2.xpose.msra.mxu0 0.0
    %611 = vmatprep.subr.mxu0 0.0
    %612 = vmatpush2.xpose.msra.mxu0 0.0
    %613 = vmatprep.subr.mxu0 0.0
    %614 = vmatpush2.xpose.msra.mxu0 0.0
    %615 = vmatprep.subr.mxu0 0.0
    %616 = vmatpush2.xpose.msra.mxu0 0.0
    %617 = vmatprep.subr.mxu0 0.0
    %618 = vmatpush2.xpose.msra.mxu0 0.0
    %619 = vmatprep.subr.mxu0 0.0
    %620 = vmatpush2.xpose.msra.mxu0 0.0
    %621 = vmatprep.subr.mxu0 0.0
    %622 = vmatpush2.xpose.msra.mxu0 0.0
    %623 = vmatprep.subr.mxu0 0.0
    %624 = vmatpush2.xpose.msra.mxu0 0.0
    %625 = vmatprep.subr.mxu0 0.0
    %626 = vmatpush2.xpose.msra.mxu0 0.0
    %627 = vmatprep.subr.mxu0 0.0
    %628 = vmatpush2.xpose.msra.mxu0 0.0
    %629 = vmatprep.subr.mxu0 0.0
    %630 = vmatpush2.xpose.msra.mxu0 0.0
    %631 = vmatprep.subr.mxu0 0.0
    %632 = vmatpush2.xpose.msra.mxu0 0.0
    %633 = vmatprep.subr.mxu0 0.0
    %634 = vmatpush2.xpose.msra.mxu0 0.0
    %635 = vmatprep.subr.mxu0 0.0
    %636 = vmatpush2.xpose.msra.mxu0 0.0
    %637 = vmatprep.mubr.f32.mxu0 0.0
    %638 = vmatmul.mubr.f32.gmra.mxu0 %v569
    %v639 = vpop.f32.mrf.mxu0
    %v640 = vadd.f32 0.0, %v639
    %v641 = vpop.f32.mrf.mxu0
    %642 = vdwg.mxu0
    %643 = vrot.lane.b32.xlu0 %v139, 104
    %v644 = vpop.permute.xlu0 %643
    %645 = vrot.lane.b32.xlu0 %v139, 72
    %v646 = vpop.permute.xlu0 %645
    %v647 = vsel %vm145, %v644, 0
    %v649 = vsel %vm145, %v646, 0
    %651 = vmatprep.subr.mxu0 0.0
    %652 = vmatpush1.xpose.msra.mxu0 0.0
    %653 = vmatprep.subr.mxu0 0.0
    %654 = vmatpush1.xpose.msra.mxu0 0.0
    %655 = vmatprep.subr.mxu0 0.0
    %656 = vmatpush1.xpose.msra.mxu0 0.0
    %657 = vmatprep.subr.mxu0 0.0
    %658 = vmatpush1.xpose.msra.mxu0 0.0
    %659 = vmatprep.subr.mxu0 0.0
    %660 = vmatpush1.xpose.msra.mxu0 0.0
    %661 = vmatprep.subr.mxu0 0.0
    %662 = vmatpush1.xpose.msra.mxu0 0.0
    %663 = vmatprep.subr.mxu0 0.0
    %664 = vmatpush1.xpose.msra.mxu0 0.0
    %665 = vmatprep.subr.mxu0 0.0
    %666 = vmatpush1.xpose.msra.mxu0 0.0
    %667 = vmatprep.subr.mxu0 0.0
    %668 = vmatpush1.xpose.msra.mxu0 0.0
    %669 = vmatprep.subr.mxu0 0.0
    %670 = vmatpush1.xpose.msra.mxu0 0.0
    %671 = vmatprep.subr.mxu0 0.0
    %672 = vmatpush1.xpose.msra.mxu0 0.0
    %673 = vmatprep.subr.mxu0 0.0
    %674 = vmatpush1.xpose.msra.mxu0 0.0
    %675 = vmatprep.subr.mxu0 0.0
    %676 = vmatpush1.xpose.msra.mxu0 0.0
    %677 = vmatprep.subr.mxu0 0.0
    %678 = vmatpush1.xpose.msra.mxu0 0.0
    %679 = vmatprep.subr.mxu0 0.0
    %680 = vmatpush1.xpose.msra.mxu0 0.0
    %681 = vmatprep.subr.mxu0 0.0
    %682 = vmatpush1.xpose.msra.mxu0 %v649
    %683 = vmatprep.subr.mxu0 0.0
    %684 = vmatpush2.xpose.msra.mxu0 0.0
    %685 = vmatprep.subr.mxu0 0.0
    %686 = vmatpush2.xpose.msra.mxu0 0.0
    %687 = vmatprep.subr.mxu0 0.0
    %688 = vmatpush2.xpose.msra.mxu0 0.0
    %689 = vmatprep.subr.mxu0 0.0
    %690 = vmatpush2.xpose.msra.mxu0 0.0
    %691 = vmatprep.subr.mxu0 0.0
    %692 = vmatpush2.xpose.msra.mxu0 0.0
    %693 = vmatprep.subr.mxu0 0.0
    %694 = vmatpush2.xpose.msra.mxu0 0.0
    %695 = vmatprep.subr.mxu0 0.0
    %696 = vmatpush2.xpose.msra.mxu0 0.0
    %697 = vmatprep.subr.mxu0 0.0
    %698 = vmatpush2.xpose.msra.mxu0 0.0
    %699 = vmatprep.subr.mxu0 0.0
    %700 = vmatpush2.xpose.msra.mxu0 0.0
    %701 = vmatprep.subr.mxu0 0.0
    %702 = vmatpush2.xpose.msra.mxu0 0.0
    %703 = vmatprep.subr.mxu0 0.0
    %704 = vmatpush2.xpose.msra.mxu0 0.0
    %705 = vmatprep.subr.mxu0 0.0
    %706 = vmatpush2.xpose.msra.mxu0 0.0
    %707 = vmatprep.subr.mxu0 0.0
    %708 = vmatpush2.xpose.msra.mxu0 0.0
    %709 = vmatprep.subr.mxu0 0.0
    %710 = vmatpush2.xpose.msra.mxu0 0.0
    %711 = vmatprep.subr.mxu0 0.0
    %712 = vmatpush2.xpose.msra.mxu0 0.0
    %713 = vmatprep.subr.mxu0 0.0
    %714 = vmatpush2.xpose.msra.mxu0 0.0
    %715 = vmatprep.mubr.f32.mxu0 0.0
    %716 = vmatmul.mubr.f32.gmra.mxu0 %v647
    %v717 = vpop.f32.mrf.mxu0
    %v718 = vadd.f32 0.0, %v717
    %v719 = vpop.f32.mrf.mxu0
    %720 = vdwg.mxu0
    %v721 = vmul.f32 %v718, 0.35355338
    %v722 = vsel %vm145, %v721, -inf
    %723 = vmax.xlane.f32.xlu0 %v722
    %v724 = vpop.xlane.xlu0 %723
    %v725 = vsub.f32 %v721, %v724
    %v726 = vmul.f32 %v725, 1.442695
    %v727 = vpow.pop %v726
    %v728 = vsel %vm145, %v727, 0.0
    %729 = vadd.xlane.f32.xlu0 %v728
    %v730 = vpop.xlane.xlu0 %729
    %v731 = vrcp.pop %v730
    %v732 = vmul.f32 %v727, %v731
    %733 = vrot.lane.b32.xlu0 %v139, 40
    %v734 = vpop.permute.xlu0 %733
    %v736 = vsel %vm145, %v732, 0
    %v738 = vsel %vm145, %v734, 0
    %740 = vmatprep.subr.mxu0 0.0
    %741 = vmatpush1.xpose.msra.mxu0 0.0
    %742 = vmatprep.subr.mxu0 0.0
    %743 = vmatpush1.xpose.msra.mxu0 0.0
    %744 = vmatprep.subr.mxu0 0.0
    %745 = vmatpush1.xpose.msra.mxu0 0.0
    %746 = vmatprep.subr.mxu0 0.0
    %747 = vmatpush1.xpose.msra.mxu0 0.0
    %748 = vmatprep.subr.mxu0 0.0
    %749 = vmatpush1.xpose.msra.mxu0 0.0
    %750 = vmatprep.subr.mxu0 0.0
    %751 = vmatpush1.xpose.msra.mxu0 0.0
    %752 = vmatprep.subr.mxu0 0.0
    %753 = vmatpush1.xpose.msra.mxu0 0.0
    %754 = vmatprep.subr.mxu0 0.0
    %755 = vmatpush1.xpose.msra.mxu0 0.0
    %756 = vmatprep.subr.mxu0 0.0
    %757 = vmatpush1.xpose.msra.mxu0 0.0
    %758 = vmatprep.subr.mxu0 0.0
    %759 = vmatpush1.xpose.msra.mxu0 0.0
    %760 = vmatprep.subr.mxu0 0.0
    %761 = vmatpush1.xpose.msra.mxu0 0.0
    %762 = vmatprep.subr.mxu0 0.0
    %763 = vmatpush1.xpose.msra.mxu0 0.0
    %764 = vmatprep.subr.mxu0 0.0
    %765 = vmatpush1.xpose.msra.mxu0 0.0
    %766 = vmatprep.subr.mxu0 0.0
    %767 = vmatpush1.xpose.msra.mxu0 0.0
    %768 = vmatprep.subr.mxu0 0.0
    %769 = vmatpush1.xpose.msra.mxu0 0.0
    %770 = vmatprep.subr.mxu0 0.0
    %771 = vmatpush1.xpose.msra.mxu0 %v738
    %772 = vmatprep.subr.mxu0 0.0
    %773 = vmatpush2.xpose.msra.mxu0 0.0
    %774 = vmatprep.subr.mxu0 0.0
    %775 = vmatpush2.xpose.msra.mxu0 0.0
    %776 = vmatprep.subr.mxu0 0.0
    %777 = vmatpush2.xpose.msra.mxu0 0.0
    %778 = vmatprep.subr.mxu0 0.0
    %779 = vmatpush2.xpose.msra.mxu0 0.0
    %780 = vmatprep.subr.mxu0 0.0
    %781 = vmatpush2.xpose.msra.mxu0 0.0
    %782 = vmatprep.subr.mxu0 0.0
    %783 = vmatpush2.xpose.msra.mxu0 0.0
    %784 = vmatprep.subr.mxu0 0.0
    %785 = vmatpush2.xpose.msra.mxu0 0.0
    %786 = vmatprep.subr.mxu0 0.0
    %787 = vmatpush2.xpose.msra.mxu0 0.0
    %788 = vmatprep.subr.mxu0 0.0
    %789 = vmatpush2.xpose.msra.mxu0 0.0
    %790 = vmatprep.subr.mxu0 0.0
    %791 = vmatpush2.xpose.msra.mxu0 0.0
    %792 = vmatprep.subr.mxu0 0.0
    %793 = vmatpush2.xpose.msra.mxu0 0.0
    %794 = vmatprep.subr.mxu0 0.0
    %795 = vmatpush2.xpose.msra.mxu0 0.0
    %796 = vmatprep.subr.mxu0 0.0
    %797 = vmatpush2.xpose.msra.mxu0 0.0
    %798 = vmatprep.subr.mxu0 0.0
    %799 = vmatpush2.xpose.msra.mxu0 0.0
    %800 = vmatprep.subr.mxu0 0.0
    %801 = vmatpush2.xpose.msra.mxu0 0.0
    %802 = vmatprep.subr.mxu0 0.0
    %803 = vmatpush2.xpose.msra.mxu0 0.0
    %804 = vmatprep.mubr.f32.mxu0 0.0
    %805 = vmatmul.mubr.f32.gmra.mxu0 %v736
    %v806 = vpop.f32.mrf.mxu0
    %v807 = vadd.f32 0.0, %v806
    %v808 = vpop.f32.mrf.mxu0
    %809 = vdwg.mxu0
    %811 = vrot.lane.b32.xlu0 %v473, 8
    %v812 = vpop.permute.xlu0 %811
    %815 = vrot.lane.b32.xlu0 %v640, 16
    %v816 = vpop.permute.xlu0 %815
    %819 = vrot.lane.b32.xlu0 %v807, 24
    %v820 = vpop.permute.xlu0 %819
    %v822 = vsel %vm145, %v306, %v812
    %vm823 = vcmask 130048
    %v824 = vsel %vm823, %v822, %v816
    %vm825 = vcmask 195584
    %v826 = vsel %vm825, %v824, %v820
    %v828 = vsel %vm32, %v826, 0
    %v831 = vsel %vm32, %v27, 0
    %v834 = vsel %vm32, %v28, 0
    %v837 = vsel %vm32, %v29, 0
    %v840 = vsel %vm32, %v30, 0
    %842 = vmatprep.subr.mxu0 0.0
    %843 = vmatpush1.xpose.msra.mxu0 0.0
    %844 = vmatprep.subr.mxu0 0.0
    %845 = vmatpush1.xpose.msra.mxu0 0.0
    %846 = vmatprep.subr.mxu0 0.0
    %847 = vmatpush1.xpose.msra.mxu0 0.0
    %848 = vmatprep.subr.mxu0 0.0
    %849 = vmatpush1.xpose.msra.mxu0 0.0
    %850 = vmatprep.subr.mxu0 0.0
    %851 = vmatpush1.xpose.msra.mxu0 0.0
    %852 = vmatprep.subr.mxu0 0.0
    %853 = vmatpush1.xpose.msra.mxu0 0.0
    %854 = vmatprep.subr.mxu0 0.0
    %855 = vmatpush1.xpose.msra.mxu0 0.0
    %856 = vmatprep.subr.mxu0 0.0
    %857 = vmatpush1.xpose.msra.mxu0 0.0
    %858 = vmatprep.subr.mxu0 0.0
    %859 = vmatpush1.xpose.msra.mxu0 0.0
    %860 = vmatprep.subr.mxu0 0.0
    %861 = vmatpush1.xpose.msra.mxu0 0.0
    %862 = vmatprep.subr.mxu0 0.0
    %863 = vmatpush1.xpose.msra.mxu0 0.0
    %864 = vmatprep.subr.mxu0 0.0
    %865 = vmatpush1.xpose.msra.mxu0 0.0
    %866 = vmatprep.subr.mxu0 0.0
    %867 = vmatpush1.xpose.msra.mxu0 %v840
    %868 = vmatprep.subr.mxu0 0.0
    %869 = vmatpush1.xpose.msra.mxu0 %v837
    %870 = vmatprep.subr.mxu0 0.0
    %871 = vmatpush1.xpose.msra.mxu0 %v834
    %872 = vmatprep.subr.mxu0 0.0
    %873 = vmatpush1.xpose.msra.mxu0 %v831
    %874 = vmatprep.subr.mxu0 0.0
    %875 = vmatpush2.xpose.msra.mxu0 0.0
    %876 = vmatprep.subr.mxu0 0.0
    %877 = vmatpush2.xpose.msra.mxu0 0.0
    %878 = vmatprep.subr.mxu0 0.0
    %879 = vmatpush2.xpose.msra.mxu0 0.0
    %880 = vmatprep.subr.mxu0 0.0
    %881 = vmatpush2.xpose.msra.mxu0 0.0
    %882 = vmatprep.subr.mxu0 0.0
    %883 = vmatpush2.xpose.msra.mxu0 0.0
    %884 = vmatprep.subr.mxu0 0.0
    %885 = vmatpush2.xpose.msra.mxu0 0.0
    %886 = vmatprep.subr.mxu0 0.0
    %887 = vmatpush2.xpose.msra.mxu0 0.0
    %888 = vmatprep.subr.mxu0 0.0
    %889 = vmatpush2.xpose.msra.mxu0 0.0
    %890 = vmatprep.subr.mxu0 0.0
    %891 = vmatpush2.xpose.msra.mxu0 0.0
    %892 = vmatprep.subr.mxu0 0.0
    %893 = vmatpush2.xpose.msra.mxu0 0.0
    %894 = vmatprep.subr.mxu0 0.0
    %895 = vmatpush2.xpose.msra.mxu0 0.0
    %896 = vmatprep.subr.mxu0 0.0
    %897 = vmatpush2.xpose.msra.mxu0 0.0
    %898 = vmatprep.subr.mxu0 0.0
    %899 = vmatpush2.xpose.msra.mxu0 0.0
    %900 = vmatprep.subr.mxu0 0.0
    %901 = vmatpush2.xpose.msra.mxu0 0.0
    %902 = vmatprep.subr.mxu0 0.0
    %903 = vmatpush2.xpose.msra.mxu0 0.0
    %904 = vmatprep.subr.mxu0 0.0
    %905 = vmatpush2.xpose.msra.mxu0 0.0
    %906 = vmatprep.mubr.f32.mxu0 0.0
    %907 = vmatmul.mubr.f32.gmra.mxu0 %v828
    %v908 = vpop.f32.mrf.mxu0
    %v909 = vadd.f32 0.0, %v908
    %v910 = vpop.f32.mrf.mxu0
    %911 = vdwg.mxu0
    %912 = vst.msk [vmem:[#allocation2] sm:$0xff] %vm32, %v909
    // Predicated region
    $region14: #{tpu_custom_call.1} parent=1 // pred_check
      _
    $region15: #{tpu_custom_call.1} parent=1 // pred_check_branch
      %914 = sbr.rel (0) target = $region17
    $region16: #{tpu_custom_call.1} parent=1 // pred_region
      %s916 = ssub.s32 128, 128
      %917 = vsyncadd [#allocation3], %s916
      %s919 = sshll.u32 [#allocation2], 4
      %s920 = int_to_ptr.vmem [resolvable:$true] %s919
      %922 = dma.vmem_to_hbm [thread:$0]  %s920, 128, %s3, [#allocation3]
    $region17: #{tpu_custom_call.1} parent=1 // pred_fallthru
      _
    // Predicated region
    $region18: #{tpu_custom_call.1} parent=1 // pred_check
      _
    $region19: #{tpu_custom_call.1} parent=1 // pred_check_branch
      %924 = sbr.rel (0) target = $region21
    $region20: #{tpu_custom_call.1} parent=1 // pred_region
      %925 = dma.done [#allocation3], 128
    $region21: #{tpu_custom_call.1} parent=1 // pred_fallthru
      _
    %926 = vsyncpa [#allocation3], 1

</llo_original>
